<compile_context>
chip_gen: v5e
topology: v5e:2x2
jax: 0.10.0
libtpu: 0.0.40
codegen_flags: <defaults>
</compile_context>

<pallas_src>
import functools

import jax
import jax.numpy as jnp
import numpy as np
from jax.experimental import pallas as pl
from jax.experimental.pallas import tpu as pltpu


def _block_kernel(src_ref, w_ref, mask_ref, o_ref, *, inv_p, eps, neg_slope):
    """One (sample, Cout-block) grid step: fused conv + InstanceNorm + LeakyReLU.

    src_ref : [1, Gc, Pq]  bf16  phase-decomposed, kh-replicated input
                                 (Gc = K*stride*Cin, Pq = Hout*Wq, spatial on lanes)
    w_ref   : [Qn, Ct, Gc] bf16  conv weights regrouped by in-kernel kw-shift q
    mask_ref: [1, Pq]      f32   1.0 on valid output columns (j < Wout), else 0.0
    o_ref   : [1, Ct, Pq]        output block (lane-dense; halo sliced off on host)
    """
    s_blk = src_ref[0]                                     # [Gc, Pq] bf16
    qn = w_ref.shape[0]
    pq = s_blk.shape[1]
    del pq  # (kept for clarity; shifts below are static slices)

    # Convolution as Qn lane-shifted matmuls: y = sum_q W_q @ shift_q(src).
    # shift_q(src)[:, p] = src[:, p + q]; the wrap-around only lands in halo
    # columns (j >= Wout), which are masked out of the statistics and sliced
    # off the output on the host.
    y = jnp.dot(w_ref[0], s_blk, preferred_element_type=jnp.float32)   # [Ct, Pq] f32
    for q in range(1, qn):                                  # static unroll (<= 3 iters)
        s_q = jnp.concatenate([s_blk[:, q:], s_blk[:, :q]], axis=1)
        y = y + jnp.dot(w_ref[q], s_q, preferred_element_type=jnp.float32)

    mask = mask_ref[...]                                    # [1, Pq] f32

    # InstanceNorm2d (affine=False): per-channel mean / variance over the true
    # Hout*Wout positions (inv_p = 1 / P_true; padded halo columns masked out).
    # Centered (two-pass) variance for numerical robustness.
    mean = jnp.sum(y * mask, axis=1, keepdims=True) * inv_p             # [Ct, 1]
    centered = (y - mean) * mask
    var = jnp.sum(centered * centered, axis=1, keepdims=True) * inv_p   # biased (PyTorch)
    rstd = jax.lax.rsqrt(var + eps)

    z = (y - mean) * rstd
    # LeakyReLU(0.2): max(z, 0.2*z) == z for z>=0, 0.2*z for z<0.
    o_ref[0] = jnp.maximum(z, neg_slope * z).astype(o_ref.dtype)


def _choose_cout_tile(cout):
    """Channel-block size: second parallel grid axis (megacore at batch 1)."""
    if cout > 128 and cout % 128 == 0:
        return 128
    return cout


def _vmem_limit_bytes():
    """~3/4 of physical VMEM: ~96 MiB on v5e/v6e (128 MiB), ~48 MiB on v7x (64 MiB)."""
    cap = 64 * 1024 * 1024
    try:
        info = pltpu.get_tpu_info()
        cap = int(getattr(info, "vmem_capacity_bytes", cap))
    except Exception:
        pass
    return int(min(cap * 3 // 4, 112 * 1024 * 1024))


def block_forward(x, weight, bias, stride, *, compute_dtype=jnp.bfloat16):
    """Forward of the PyTorch `Block`.

    x: [N, Cin, H, W] (NCHW), weight: [Cout, Cin, 4, 4] (OIHW), bias: [Cout].
    """
    # Exactly cancelled by InstanceNorm(affine=False) mean subtraction.
    # NOTE: if the norm is ever removed, the bias must be re-added.
    del bias

    N, Cin, H, W = x.shape
    Cout, _, K, _ = weight.shape
    s = int(stride)

    xp = jnp.pad(x, ((0, 0), (0, 0), (1, 1), (1, 1)), mode="reflect")
    Hp, Wp = H + 2, W + 2
    Hout = (Hp - K) // s + 1
    Wout = (Wp - K) // s + 1
    Qn = (K + s - 1) // s               # number of in-kernel kw shifts
    max_q = (K - 1) // s
    Wq = Wout + max_q                   # per-phase row width incl. right halo
    Pq = Hout * Wq                      # flattened (lane-dense) spatial extent
    Gc = K * s * Cin                    # (kh, w-phase, Cin) contraction depth

    xp = xp.astype(compute_dtype)

    # ---- host-side "phase im2col": replicate only along kh & the width phase.
    # src[n, (kh*s+pw)*Cin + c, ho*Wq + j] = xp[n, c, s*ho + kh, s*j + pw]
    groups = []
    for kh in range(K):
        rows = xp[:, :, kh:kh + s * (Hout - 1) + 1:s, :]            # [N, Cin, Hout, Wp]
        for pw in range(s):
            avail = (Wp - pw + s - 1) // s
            take = min(Wq, avail)
            g = rows[:, :, :, pw:pw + s * (take - 1) + 1:s]         # [N, Cin, Hout, take]
            if take < Wq:
                g = jnp.pad(g, ((0, 0), (0, 0), (0, 0), (0, Wq - take)))
            groups.append(g)
    src = jnp.stack(groups, axis=1).reshape(N, Gc, Pq)              # [N, Gc, Pq] bf16

    # ---- weights regrouped by kw-shift q:
    # w_mat[q, co, (kh*s+pw)*Cin + c] = weight[co, c, kh, q*s + pw]
    wq_blocks = []
    for q in range(Qn):
        cols = []
        for kh in range(K):
            for pw in range(s):
                kw = q * s + pw
                if kw < K:
                    cols.append(weight[:, :, kh, kw])
                else:
                    cols.append(jnp.zeros((Cout, Cin), weight.dtype))
        wq_blocks.append(jnp.concatenate(cols, axis=1))             # [Cout, Gc]
    w_mat = jnp.stack(wq_blocks, axis=0).astype(compute_dtype)      # [Qn, Cout, Gc]

    # ---- validity mask over the flattened (Hout, Wq) output columns.
    col_valid = (np.arange(Wq) < Wout).astype(np.float32)
    mask = jnp.asarray(np.tile(col_valid, Hout)).reshape(1, Pq)     # [1, Pq] f32

    Ct = _choose_cout_tile(Cout)
    n_cb = Cout // Ct

    kernel = functools.partial(
        _block_kernel,
        inv_p=1.0 / float(Hout * Wout),
        eps=1e-5,
        neg_slope=0.2,
    )

    out_flat = pl.pallas_call(
        kernel,
        out_shape=jax.ShapeDtypeStruct((N, Cout, Pq), x.dtype),
        grid_spec=pltpu.PrefetchScalarGridSpec(
            num_scalar_prefetch=0,
            grid=(N, n_cb),
            in_specs=[
                pl.BlockSpec((1, Gc, Pq), lambda n, cb: (n, 0, 0)),    # input slab (reused across cb)
                pl.BlockSpec((Qn, Ct, Gc), lambda n, cb: (0, cb, 0)),  # weights
                pl.BlockSpec((1, Pq), lambda n, cb: (0, 0)),           # validity mask
            ],
            out_specs=pl.BlockSpec((1, Ct, Pq), lambda n, cb: (n, cb, 0)),
        ),
        compiler_params=pltpu.CompilerParams(
            dimension_semantics=("parallel", "parallel"),
            vmem_limit_bytes=_vmem_limit_bytes(),
        ),
    )(src, w_mat, mask)

    # [N, Cout, Hout*Wq] is already NCHW-ordered; strip the right halo columns.
    return out_flat.reshape(N, Cout, Hout, Wq)[:, :, :, :Wout]


def ref_forward(x, weight, bias, stride, conv_dtype=None):
    """Pure-JAX reference of the PyTorch Block forward.

    conv_dtype=None -> full f32; conv_dtype=bf16 -> matches the kernel's MXU
    precision (bf16 operands, f32 accumulation) for a tight comparison.
    """
    xp = jnp.pad(x, ((0, 0), (0, 0), (1, 1), (1, 1)), mode="reflect")
    w = weight
    if conv_dtype is not None:
        xp = xp.astype(conv_dtype)
        w = w.astype(conv_dtype)
    y = jax.lax.conv_general_dilated(
        xp, w, (stride, stride), "VALID",
        dimension_numbers=("NCHW", "OIHW", "NCHW"),
        preferred_element_type=jnp.float32)
    y = y + bias.reshape(1, -1, 1, 1).astype(jnp.float32)
    mean = y.mean(axis=(2, 3), keepdims=True)
    var = jnp.mean((y - mean) ** 2, axis=(2, 3), keepdims=True)
    yn = (y - mean) * jax.lax.rsqrt(var + 1e-5)
    return jnp.where(yn >= 0, yn, 0.2 * yn).astype(x.dtype)


if __name__ == "__main__":
    key = jax.random.PRNGKey(0)
    k1, k2, k3 = jax.random.split(key, 3)

    # small shapes consistent with the module
    N, Cin, H, W = 2, 4, 16, 16
    Cout, K = 8, 4

    x = jax.random.normal(k1, (N, Cin, H, W), jnp.float32)

    # deterministic param init (PyTorch-style uniform bounds from fan_in)
    fan_in = Cin * K * K
    bound = 1.0 / float(np.sqrt(fan_in))
    weight = jax.random.uniform(k2, (Cout, Cin, K, K), jnp.float32, -bound, bound)
    bias = jax.random.uniform(k3, (Cout,), jnp.float32, -bound, bound)

    for stride in (2, 1):  # CycleGAN discriminator uses both stride-2 and stride-1 Blocks
        fwd = jax.jit(lambda x_, w_, b_, s_=stride: block_forward(x_, w_, b_, s_))
        out = jax.block_until_ready(fwd(x, weight, bias))
        Hout = (H + 2 - K) // stride + 1
        assert out.shape == (N, Cout, Hout, Hout), out.shape

        ref_matched = ref_forward(x, weight, bias, stride, conv_dtype=jnp.bfloat16)
        ref_f32 = ref_forward(x, weight, bias, stride, conv_dtype=None)
        assert np.allclose(np.asarray(out), np.asarray(ref_matched), atol=5e-4), \
            f"stride={stride}: mismatch vs precision-matched reference"
        assert np.allclose(np.asarray(out), np.asarray(ref_f32), atol=5e-2), \
            f"stride={stride}: mismatch vs f32 reference"

    print("KERNEL_OK")
</pallas_src>

<mosaic_0001>
module attributes {stable_mosaic.version = 11 : i64} {
  func.func @_block_kernel(%arg0: i32, %arg1: i32, %arg2: memref<1x32x72xbf16, #tpu.memory_space<vmem>>, %arg3: memref<2x8x32xbf16, #tpu.memory_space<vmem>>, %arg4: memref<1x72xf32, #tpu.memory_space<vmem>>, %arg5: memref<1x8x72xf32, #tpu.memory_space<vmem>>) attributes {dimension_semantics = [#tpu.dimension_semantics<parallel>, #tpu.dimension_semantics<parallel>], iteration_bounds = array<i64: 2, 1>, scalar_prefetch = 0 : i64, scratch_operands = 0 : i64, tpu.core_type = #tpu.core_type<tc>, window_params = [{transform_indices = @transform_0, window_bounds = array<i64: 1, 32, 72>}, {transform_indices = @transform_1, window_bounds = array<i64: 2, 8, 32>}, {pipeline_mode = #tpu.pipeline_mode<synchronous>, transform_indices = @transform_2, window_bounds = array<i64: 1, 72>}, {transform_indices = @transform_3, window_bounds = array<i64: 1, 8, 72>}]} {
    %c0 = arith.constant 0 : index
    %c0_0 = arith.constant 0 : index
    %c0_1 = arith.constant 0 : index
    %0 = vector.load %arg2[%c0, %c0_0, %c0_1] : memref<1x32x72xbf16, #tpu.memory_space<vmem>>, vector<1x32x72xbf16>
    %1 = vector.shape_cast %0 : vector<1x32x72xbf16> to vector<32x72xbf16>
    %c0_2 = arith.constant 0 : index
    %c0_3 = arith.constant 0 : index
    %c0_4 = arith.constant 0 : index
    %2 = vector.load %arg3[%c0_2, %c0_3, %c0_4] : memref<2x8x32xbf16, #tpu.memory_space<vmem>>, vector<1x8x32xbf16>
    %3 = vector.shape_cast %2 : vector<1x8x32xbf16> to vector<8x32xbf16>
    %cst = arith.constant dense<0.000000e+00> : vector<8x72xf32>
    %4 = tpu.matmul %3, %1, %cst {dimension_numbers = #tpu.dot_dimension_numbers<[1], [0], [0], [1], [0, 0, 1, 1], [], []>} : vector<8x32xbf16>, vector<32x72xbf16>, vector<8x72xf32> -> vector<8x72xf32>
    %5 = vector.extract_strided_slice %1 {offsets = [0, 1], sizes = [32, 71], strides = [1, 1]} : vector<32x72xbf16> to vector<32x71xbf16>
    %6 = vector.extract_strided_slice %1 {offsets = [0, 0], sizes = [32, 1], strides = [1, 1]} : vector<32x72xbf16> to vector<32x1xbf16>
    %7 = tpu.concatenate %5, %6 in 1 : vector<32x71xbf16>, vector<32x1xbf16> -> vector<32x72xbf16>
    %c1 = arith.constant 1 : index
    %c0_5 = arith.constant 0 : index
    %c0_6 = arith.constant 0 : index
    %8 = vector.load %arg3[%c1, %c0_5, %c0_6] : memref<2x8x32xbf16, #tpu.memory_space<vmem>>, vector<1x8x32xbf16>
    %9 = vector.shape_cast %8 : vector<1x8x32xbf16> to vector<8x32xbf16>
    %cst_7 = arith.constant dense<0.000000e+00> : vector<8x72xf32>
    %10 = tpu.matmul %9, %7, %cst_7 {dimension_numbers = #tpu.dot_dimension_numbers<[1], [0], [0], [1], [0, 0, 1, 1], [], []>} : vector<8x32xbf16>, vector<32x72xbf16>, vector<8x72xf32> -> vector<8x72xf32>
    %11 = arith.addf %4, %10 : vector<8x72xf32>
    %c0_8 = arith.constant 0 : index
    %c0_9 = arith.constant 0 : index
    %12 = vector.load %arg4[%c0_8, %c0_9] : memref<1x72xf32, #tpu.memory_space<vmem>>, vector<1x72xf32>
    %13 = vector.broadcast %12 : vector<1x72xf32> to vector<8x72xf32>
    %14 = arith.mulf %11, %13 : vector<8x72xf32>
    %cst_10 = arith.constant dense<0.000000e+00> : vector<8xf32>
    %15 = vector.multi_reduction <add>, %14, %cst_10 [1] : vector<8x72xf32> to vector<8xf32>
    %16 = vector.shape_cast %15 : vector<8xf32> to vector<8x1xf32>
    %cst_11 = arith.constant 1.562500e-02 : f32
    %17 = vector.broadcast %cst_11 : f32 to vector<8x1xf32>
    %18 = arith.mulf %16, %17 : vector<8x1xf32>
    %19 = vector.broadcast %18 : vector<8x1xf32> to vector<8x72xf32>
    %20 = arith.subf %11, %19 : vector<8x72xf32>
    %21 = vector.broadcast %12 : vector<1x72xf32> to vector<8x72xf32>
    %22 = arith.mulf %20, %21 : vector<8x72xf32>
    %23 = arith.mulf %22, %22 : vector<8x72xf32>
    %cst_12 = arith.constant dense<0.000000e+00> : vector<8xf32>
    %24 = vector.multi_reduction <add>, %23, %cst_12 [1] : vector<8x72xf32> to vector<8xf32>
    %25 = vector.shape_cast %24 : vector<8xf32> to vector<8x1xf32>
    %cst_13 = arith.constant 1.562500e-02 : f32
    %26 = vector.broadcast %cst_13 : f32 to vector<8x1xf32>
    %27 = arith.mulf %25, %26 : vector<8x1xf32>
    %cst_14 = arith.constant 9.99999974E-6 : f32
    %28 = vector.broadcast %cst_14 : f32 to vector<8x1xf32>
    %29 = arith.addf %27, %28 : vector<8x1xf32>
    %30 = math.rsqrt %29 : vector<8x1xf32>
    %31 = vector.broadcast %18 : vector<8x1xf32> to vector<8x72xf32>
    %32 = arith.subf %11, %31 : vector<8x72xf32>
    %33 = vector.broadcast %30 : vector<8x1xf32> to vector<8x72xf32>
    %34 = arith.mulf %32, %33 : vector<8x72xf32>
    %cst_15 = arith.constant 2.000000e-01 : f32
    %35 = vector.broadcast %cst_15 : f32 to vector<8x72xf32>
    %36 = arith.mulf %35, %34 : vector<8x72xf32>
    %37 = arith.maximumf %34, %36 : vector<8x72xf32>
    %c0_16 = arith.constant 0 : index
    %c0_17 = arith.constant 0 : index
    %c0_18 = arith.constant 0 : index
    %38 = vector.load %arg5[%c0_16, %c0_17, %c0_18] : memref<1x8x72xf32, #tpu.memory_space<vmem>>, vector<1x8x72xf32>
    %39 = vector.shape_cast %38 : vector<1x8x72xf32> to vector<8x72xf32>
    %40 = vector.shape_cast %37 : vector<8x72xf32> to vector<1x8x72xf32>
    tpu.vector_store %arg5[%c0_16, %c0_17, %c0_18], %40 {strides = array<i32>} : memref<1x8x72xf32, #tpu.memory_space<vmem>>, vector<1x8x72xf32>,
    return
  }
  func.func @transform_0(%arg0: i32, %arg1: i32) -> (i32, i32, i32) {
    %c0_i32 = arith.constant 0 : i32
    %c0_i32_0 = arith.constant 0 : i32
    %c0_i32_1 = arith.constant 0 : i32
    return %arg0, %c0_i32, %c0_i32_0 : i32, i32, i32
  }
  func.func @transform_1(%arg0: i32, %arg1: i32) -> (i32, i32, i32) {
    %c0_i32 = arith.constant 0 : i32
    %c0_i32_0 = arith.constant 0 : i32
    %c0_i32_1 = arith.constant 0 : i32
    return %c0_i32, %arg1, %c0_i32_0 : i32, i32, i32
  }
  func.func @transform_2(%arg0: i32, %arg1: i32) -> (i32, i32) {
    %c0_i32 = arith.constant 0 : i32
    %c0_i32_0 = arith.constant 0 : i32
    %c0_i32_1 = arith.constant 0 : i32
    return %c0_i32, %c0_i32_0 : i32, i32
  }
  func.func @transform_3(%arg0: i32, %arg1: i32) -> (i32, i32, i32) {
    %c0_i32 = arith.constant 0 : i32
    %c0_i32_0 = arith.constant 0 : i32
    return %arg0, %arg1, %c0_i32 : i32, i32, i32
  }
}

</mosaic_0001>

<llo_original>
// kernel: _lambda_.1
$region0: #{_lambda_.1}
  #allocation0 [shape = 'u32[]', space=smem, size = 0x4, offset = 0x4, fixed_abs, tag = 'smem constant byte address 0x4 - core index']
  #allocation1 [shape = 'u32[72,128]{1,0:T(1,128)}', space=vmem, size = 0x9000, scoped, tag = 'internal scratch']
  %s0 = inlined_call_operand.vmem [shape: bf16[2,32,72], index: 0, kind: input, shape index: {}]
  %s1 = inlined_call_operand.vmem [shape: bf16[2,8,32], index: 1, kind: input, shape index: {}]
  %s2 = inlined_call_operand.vmem [shape: f32[1,72], index: 2, kind: input, shape index: {}]
  %s3 = inlined_call_operand.vmem [shape: f32[2,8,72], index: 3, kind: output, shape index: {}]
  %s4 = sld [smem:[#allocation0]]
  $region45: #{_lambda_.1} parent=0
    _
  %s6 = ssub.s32 1, %s4
  %s7 = scalar_select 0, %s6, %s4
  loop: start=0, step=1, limit=4
  $region2: #{_lambda_.1} parent=0 // loop_pre_header
    _
  $region3: #{_lambda_.1} parent=0 // loop_header
    %s9 = sphi 0, %s13
    %p10 = scmp.ge.s32.totalorder %s9, 4
    %s16 = sphi 0, %s28
    %s17 = sphi 0, %s24
    %s18 = sphi 0, %s16
    %s19 = sphi 0, %s17
    %s20 = sphi 0, %s18
    %s21 = sphi 0, %s19
    %s31 = sphi 0, %s33
    %s34 = sphi 0, %s31
    %s35 = sphi 0, %s34
    %s51 = sphi 0, %s35
    %s57 = sphi 0, %s59
    %s60 = sphi 0, %s57
    %s61 = sphi 0, %s60
    %s77 = sphi 0, %s61
    %s81 = sphi 0, %s81
    %s83 = sphi 0, %s81
    %s84 = sphi 0, %s83
    %s98 = sphi 0, %s84
    %s106 = sphi 0, %s108
    %s109 = sphi 0, %s106
    %s110 = sphi 0, %s109
    %s126 = sphi 0, %s110
  $region4: #{_lambda_.1} parent=0 // loop_header_branch
    %12 = sbr.rel (%p10) target = $region8
  $region5: #{_lambda_.1} parent=0 // loop_body
    %s14 = ssub.s32 %s9, 1
    %s15 = ssub.s32 %s9, 2
    %s22 = sadd.s32 1, %s17
    %p23 = scmp.ge.s32.totalorder %s22, 1
    %s24 = scalar_select %p23, 0, %s22
    %s25 = sadd.s32 1, %s16
    %s26 = scalar_select %p23, %s25, %s16
    %p27 = scmp.ge.s32.totalorder %s26, 2
    %s28 = scalar_select %p27, 0, %s26
    %s29 = ssub.s32 %s16, %s28
    %p30 = scmp.eq.s32.totalorder %s29, 0
    %s32 = sadd.s32 %s31, 1
    %s33 = scalar_select %p30, %s31, %s32
    %p36 = pneg %p30
    %p37 = scmp.eq.s32.totalorder %s9, 1
    %p38 = por %p36, %p37
    %p39 = scmp.ne.s32.totalorder %s31, %s34
    %p40 = scmp.eq.s32.totalorder %s9, 0
    %p41 = por %p39, %p40
    %p42 = scmp.ne.s32.totalorder %s31, %s34
    %p43 = scmp.eq.s32.totalorder %s14, 1
    %p44 = por %p42, %p43
    %p45 = scmp.ne.s32.totalorder %s34, %s35
    %p46 = scmp.eq.s32.totalorder %s14, 0
    %p47 = por %p45, %p46
    %p48 = scmp.ne.s32.totalorder %s34, %s35
    %p49 = scmp.eq.s32.totalorder %s15, 1
    %p50 = por %p48, %p49
    %p52 = scmp.ne.s32.totalorder %s35, %s51
    %p53 = scmp.eq.s32.totalorder %s15, 0
    %p54 = por %p52, %p53
    %s55 = ssub.s32 %s17, %s24
    %p56 = scmp.eq.s32.totalorder %s55, 0
    %s58 = sadd.s32 %s57, 1
    %s59 = scalar_select %p56, %s57, %s58
    %p62 = pneg %p56
    %p63 = scmp.eq.s32.totalorder %s9, 1
    %p64 = por %p62, %p63
    %p65 = scmp.ne.s32.totalorder %s57, %s60
    %p66 = scmp.eq.s32.totalorder %s9, 0
    %p67 = por %p65, %p66
    %p68 = scmp.ne.s32.totalorder %s57, %s60
    %p69 = scmp.eq.s32.totalorder %s14, 1
    %p70 = por %p68, %p69
    %p71 = scmp.ne.s32.totalorder %s60, %s61
    %p72 = scmp.eq.s32.totalorder %s14, 0
    %p73 = por %p71, %p72
    %p74 = scmp.ne.s32.totalorder %s60, %s61
    %p75 = scmp.eq.s32.totalorder %s15, 1
    %p76 = por %p74, %p75
    %p78 = scmp.ne.s32.totalorder %s61, %s77
    %p79 = scmp.eq.s32.totalorder %s15, 0
    %p80 = por %p78, %p79
    %s82 = sadd.s32 %s81, 1
    %p85 = scmp.eq.s32.totalorder %s9, 1
    %p86 = scmp.ne.s32.totalorder %s81, %s83
    %p87 = scmp.eq.s32.totalorder %s9, 0
    %p88 = por %p86, %p87
    %p89 = scmp.ne.s32.totalorder %s81, %s83
    %p90 = scmp.eq.s32.totalorder %s14, 1
    %p91 = por %p89, %p90
    %p92 = scmp.ne.s32.totalorder %s83, %s84
    %p93 = scmp.eq.s32.totalorder %s14, 0
    %p94 = por %p92, %p93
    %p95 = scmp.ne.s32.totalorder %s83, %s84
    %p96 = scmp.eq.s32.totalorder %s15, 1
    %p97 = por %p95, %p96
    %p99 = scmp.ne.s32.totalorder %s84, %s98
    %p100 = scmp.eq.s32.totalorder %s15, 0
    %p101 = por %p99, %p100
    %s102 = ssub.s32 %s16, %s28
    %s103 = ssub.s32 %s17, %s24
    %s104 = sor.u32 %s102, %s103
    %p105 = scmp.eq.s32.totalorder %s104, 0
    %s107 = sadd.s32 %s106, 1
    %s108 = scalar_select %p105, %s106, %s107
    %p111 = pneg %p105
    %p112 = scmp.eq.s32.totalorder %s9, 1
    %p113 = por %p111, %p112
    %p114 = scmp.ne.s32.totalorder %s106, %s109
    %p115 = scmp.eq.s32.totalorder %s9, 0
    %p116 = por %p114, %p115
    %p117 = scmp.ne.s32.totalorder %s106, %s109
    %p118 = scmp.eq.s32.totalorder %s14, 1
    %p119 = por %p117, %p118
    %p120 = scmp.ne.s32.totalorder %s109, %s110
    %p121 = scmp.eq.s32.totalorder %s14, 0
    %p122 = por %p120, %p121
    %p123 = scmp.ne.s32.totalorder %s109, %s110
    %p124 = scmp.eq.s32.totalorder %s15, 1
    %p125 = por %p123, %p124
    %p127 = scmp.ne.s32.totalorder %s110, %s126
    %p128 = scmp.eq.s32.totalorder %s15, 0
    %p129 = por %p127, %p128
    %p130 = scmp.le.s32.totalorder 1, %s9
    %p131 = scmp.lt.s32.totalorder %s9, 3
    %p132 = pnand %p130, %p131
    %p133 = pneg %p132
    // Predicated region
    $region9: #{_lambda_.1} parent=5 // pred_check
      _
    $region10: #{_lambda_.1} parent=5 // pred_check_branch
      %135 = sbr.rel (%p132) target = $region12
    $region11: #{_lambda_.1} parent=5 // pred_region
      %s136 = ssub.s32 %s9, 1
      // Predicated region
      $region13: #{_lambda_.1} parent=11 // pred_check
        %p137 = pneg %p73
      $region14: #{_lambda_.1} parent=11 // pred_check_branch
        %139 = sbr.rel (%p137) target = $region16
      $region15: #{_lambda_.1} parent=11 // pred_region
        %p140 = scmp.lt.s32.totalorder %s19, 0
        %s141 = scalar_select %p140, %s19, 0
        %s142 = smul.addr %s141, 4
        %s143 = scalar_lea.vmem %s1, %s142
      $region16: #{_lambda_.1} parent=11 // pred_fallthru
        _
      // Predicated region
      $region17: #{_lambda_.1} parent=11 // pred_check
        %p144 = pneg %p94
      $region18: #{_lambda_.1} parent=11 // pred_check_branch
        %146 = sbr.rel (%p144) target = $region20
      $region19: #{_lambda_.1} parent=11 // pred_region
        _
      $region20: #{_lambda_.1} parent=11 // pred_fallthru
        _
    $region12: #{_lambda_.1} parent=5 // pred_fallthru
      _
    %p147 = scmp.lt.s32.totalorder %s9, 2
    // Predicated region
    $region21: #{_lambda_.1} parent=5 // pred_check
      %p148 = pneg %p147
    $region22: #{_lambda_.1} parent=5 // pred_check_branch
      %150 = sbr.rel (%p148) target = $region24
    $region23: #{_lambda_.1} parent=5 // pred_region
      // Predicated region
      $region25: #{_lambda_.1} parent=23 // pred_check
        %p151 = pneg %p41
      $region26: #{_lambda_.1} parent=23 // pred_check_branch
        %153 = sbr.rel (%p151) target = $region28
      $region27: #{_lambda_.1} parent=23 // pred_region
        %p154 = scmp.lt.s32.totalorder %s16, 1
        %s155 = scalar_select %p154, %s16, 1
        %s156 = smul.addr %s155, 4
        %s157 = smul.addr %s156, 4
        %s158 = scalar_lea.vmem %s0, %s157
      $region28: #{_lambda_.1} parent=23 // pred_fallthru
        _
    $region24: #{_lambda_.1} parent=5 // pred_fallthru
      _
    %p159 = scmp.le.s32.totalorder 1, %s9
    %p160 = scmp.lt.s32.totalorder %s9, 3
    %p161 = pnand %p159, %p160
    %p162 = pneg %p161
    // Predicated region
    $region29: #{_lambda_.1} parent=5 // pred_check
      _
    $region30: #{_lambda_.1} parent=5 // pred_check_branch
      %164 = sbr.rel (%p161) target = $region32
    $region31: #{_lambda_.1} parent=5 // pred_region
      %s165 = ssub.s32 %s9, 1
      %p166 = scmp.lt.s32.totalorder %s18, 1
      %s167 = scalar_select %p166, %s18, 1
      %s168 = smul.addr %s167, 4
      %s169 = smul.addr %s168, 4
      %s170 = scalar_lea.vmem %s0, %s169
      %p171 = pneg %p47
      %p172 = pneg %p44
      %p173 = scmp.lt.s32.totalorder %s19, 0
      %s174 = scalar_select %p173, %s19, 0
      %s175 = smul.addr %s174, 4
      %s176 = scalar_lea.vmem %s1, %s175
      %p177 = pneg %p73
      %p178 = pneg %p70
      %p179 = pneg %p94
      %p180 = pneg %p91
      %p181 = pneg %p122
      %p182 = pneg %p119
      %p183 = scmp.lt.s32.totalorder %s18, 1
      %s184 = scalar_select %p183, %s18, 1
      %p185 = scmp.lt.s32.totalorder %s19, 0
      %s186 = scalar_select %p185, %s19, 0
      %s187 = sadd.s32 %s186, %s184
      %s188 = smul.addr %s187, 8
      %s189 = scalar_lea.vmem %s3, %s188
      %p190 = scmp.lt.s32.totalorder %s18, 1
      %s191 = scalar_select %p190, %s18, 1
      %s192 = smul.addr %s191, 4
      %s193 = smul.addr %s192, 4
      %s194 = scalar_lea.vmem %s0, %s193
      %p195 = scmp.lt.s32.totalorder %s19, 0
      %s196 = scalar_select %p195, %s19, 0
      %s197 = smul.addr %s196, 4
      %s198 = scalar_lea.vmem %s1, %s197
      %p199 = scmp.lt.s32.totalorder %s18, 1
      %s200 = scalar_select %p199, %s18, 1
      %p201 = scmp.lt.s32.totalorder %s19, 0
      %s202 = scalar_select %p201, %s19, 0
      %s203 = sadd.s32 %s202, %s200
      %s204 = smul.addr %s203, 8
      %s205 = scalar_lea.vmem %s3, %s204
      %v207 = vld [vmem:[%s194] sm:$0xf]
      %v208 = vld [vmem:[%s194 + $0x4] sm:$0xf]
      %v209 = vld [vmem:[%s194 + $0x8] sm:$0xf]
      %v210 = vld [vmem:[%s194 + $0xc] sm:$0xf]
      %v211 = vld [vmem:[%s198] sm:$0xf]
      %v216 = vunpack.c.l.b16 %v207
      %v217 = vunpack.c.l.b16 %v208
      %v218 = vunpack.c.l.b16 %v209
      %v219 = vunpack.c.l.b16 %v210
      %v220 = vpack.c.b16 %v217, %v216
      %v221 = vpack.c.b16 %v219, %v218
      %222 = vrot.lane.b32.xlu0 %v220, 127
      %v223 = vpop.permute.xlu0 %222
      %224 = vrot.lane.b32.xlu0 %v221, 127
      %v225 = vpop.permute.xlu0 %224
      %226 = vrot.lane.b32.xlu0 %v220, 71
      %v227 = vpop.permute.xlu0 %226
      %228 = vrot.lane.b32.xlu0 %v221, 71
      %v229 = vpop.permute.xlu0 %228
      %vm230 = vcmask 580608
      %v233 = vsel %vm230, %v223, %v227
      %v237 = vsel %vm230, %v225, %v229
      %s239 = scalar_lea.vmem %s198, 4
      %v240 = vld [vmem:[%s239] sm:$0xf]
      %vm241 = vcmask 261120
      %v243 = vsel %vm241, %v240, 0
      %245 = vmatpush.bf16.msra.mxu0 0
      %246 = vmatpush.bf16.msra.mxu0 0
      %247 = vmatpush.bf16.msra.mxu0 0
      %248 = vmatpush.bf16.msra.mxu0 0
      %249 = vmatpush.bf16.msra.mxu0 0
      %250 = vmatpush.bf16.msra.mxu0 0
      %251 = vmatpush.bf16.msra.mxu0 %v237
      %252 = vmatpush.bf16.msra.mxu0 %v233
      %253 = vmatmul.bf16.gmra.mxu0 %v243
      %v254 = vpop.f32.mrf.mxu0
      %v255 = vadd.f32 0.0, %v254
      %v256 = vpop.f32.mrf.mxu0
      %257 = vdwg.mxu0
      %v261 = vsel %vm241, %v211, 0
      %263 = vmatpush.bf16.msra.mxu0 0
      %264 = vmatpush.bf16.msra.mxu0 0
      %265 = vmatpush.bf16.msra.mxu0 0
      %266 = vmatpush.bf16.msra.mxu0 0
      %267 = vmatpush.bf16.msra.mxu0 0
      %268 = vmatpush.bf16.msra.mxu0 0
      %269 = vmatpush.bf16.msra.mxu0 %v221
      %270 = vmatpush.bf16.msra.mxu0 %v220
      %271 = vmatmul.bf16.gmra.mxu0 %v261
      %v272 = vpop.f32.mrf.mxu0
      %v273 = vadd.f32 %v255, %v272
      %v274 = vpop.f32.mrf.mxu0
      %275 = vdwg.mxu0
      %v276 = vld [vmem:[%s2] sm:$0x1]
      %v278 = vperm.slane %v276, 0
      %v280 = vmul.f32 %v273, %v278
      %vm281 = vcmask 588800
      %v282 = vsel %vm281, %v280, 0.0
      %283 = vadd.xlane.f32.xlu0 %v282
      %v284 = vpop.xlane.xlu0 %283
      %v285 = vmul.f32 %v284, 0.015625
      %v286 = vsub.f32 %v273, %v285
      %v287 = vmul.f32 %v286, %v278
      %v288 = vmul.f32 %v287, %v287
      %v289 = vsel %vm281, %v288, 0.0
      %290 = vadd.xlane.f32.xlu0 %v289
      %v291 = vpop.xlane.xlu0 %290
      %v292 = vmul.f32 %v291, 0.015625
      %v293 = vadd.f32 %v292, 1e-05
      %v294 = vrsqrt.pop %v293
      %v295 = vmul.f32 %v294, %v293
      %v296 = vmul.f32 %v295, %v294
      %v297 = vmul.f32 0.5, %v296
      %v298 = vsub.f32 1.5, %v297
      %v299 = vmul.f32 %v294, %v298
      %vm300 = vweird.f32 %v293
      %vm301 = vweird.f32 %v294
      %vm302 = vmor %vm300, %vm301
      %v303 = vsel %vm302, %v294, %v299
      %v304 = vmul.f32 %v286, %v303
      %v305 = vmul.f32 %v304, 0.2
      %v306 = vmax.f32 %v304, %v305
      %307 = vst.msk [vmem:[%s205] sm:$0xff] %vm281, %v306
      %p308 = scmp.lt.s32.totalorder %s18, 1
      %s309 = scalar_select %p308, %s18, 1
      %p310 = scmp.lt.s32.totalorder %s19, 0
      %s311 = scalar_select %p310, %s19, 0
      %s312 = sadd.s32 %s311, %s309
      %s313 = smul.addr %s312, 8
      %s314 = scalar_lea.vmem %s3, %s313
      // Predicated region
      $region33: #{_lambda_.1} parent=31 // pred_check
        %p315 = pneg %p119
      $region34: #{_lambda_.1} parent=31 // pred_check_branch
        %317 = sbr.rel (%p315) target = $region36
      $region35: #{_lambda_.1} parent=31 // pred_region
        _
      $region36: #{_lambda_.1} parent=31 // pred_fallthru
        _
    $region32: #{_lambda_.1} parent=5 // pred_fallthru
      _
    %p318 = scmp.le.s32.totalorder 2, %s9
    // Predicated region
    $region37: #{_lambda_.1} parent=5 // pred_check
      %p319 = pneg %p318
    $region38: #{_lambda_.1} parent=5 // pred_check_branch
      %321 = sbr.rel (%p319) target = $region40
    $region39: #{_lambda_.1} parent=5 // pred_region
      %s322 = ssub.s32 %s9, 2
      // Predicated region
      $region41: #{_lambda_.1} parent=39 // pred_check
        %p323 = pneg %p125
      $region42: #{_lambda_.1} parent=39 // pred_check_branch
        %325 = sbr.rel (%p323) target = $region44
      $region43: #{_lambda_.1} parent=39 // pred_region
        %p326 = scmp.lt.s32.totalorder %s20, 1
        %s327 = scalar_select %p326, %s20, 1
        %p328 = scmp.lt.s32.totalorder %s21, 0
        %s329 = scalar_select %p328, %s21, 0
        %s330 = sadd.s32 %s329, %s327
        %s331 = smul.addr %s330, 8
        %s332 = scalar_lea.vmem %s3, %s331
      $region44: #{_lambda_.1} parent=39 // pred_fallthru
        _
    $region40: #{_lambda_.1} parent=5 // pred_fallthru
      _
  $region6: #{_lambda_.1} parent=0 // loop_footer
    %s13 = sadd.s32 1, %s9
  $region7: #{_lambda_.1} parent=0 // loop_footer_branch
    %8 = sbr.rel target = $region3
  $region8: #{_lambda_.1} parent=0 // loop_exit
    _

</llo_original>
